<compile_context>
chip_gen: v5e
topology: v5e:2x2
jax: 0.10.0
libtpu: 0.0.40
codegen_flags: <defaults>
</compile_context>

<pallas_src>
import math

import jax
import jax.numpy as jnp
from jax.experimental import pallas as pl
from jax.experimental.pallas import tpu as pltpu


def _copy_kernel(x_ref, o_ref):
    # Order <= 1 spline prefilter: coefficients == values.
    o_ref[...] = x_ref[...]


_LANE = 128
# Per-block byte budget: 4 MiB -> in+out, double-buffered ~= 16 MiB live VMEM.
_MAX_TILE_BYTES = 4 << 20


def _sublane_multiple(dtype):
    # Sub-32-bit dtypes pack along sublanes: 8 for 32-bit, 16 for 16-bit, 32 for 8-bit.
    return {1: 32, 2: 16, 4: 8, 8: 8}.get(jnp.dtype(dtype).itemsize, 8)


def _tiled_copy_2d(x2):
    """Identity copy of a 2D slab, tiled in large lane-dense row blocks."""
    r, c = x2.shape
    dtype = x2.dtype
    itemsize = jnp.dtype(dtype).itemsize
    sub = _sublane_multiple(dtype)

    rows_cap = max(1, _MAX_TILE_BYTES // max(1, c * itemsize))
    if r <= rows_cap:
        tr = r  # whole array in one block (full-extent dims are (8,128)-exempt)
    else:
        tr = max(sub, (rows_cap // sub) * sub)
    grid_r = pl.cdiv(r, tr)

    return pl.pallas_call(
        _copy_kernel,
        out_shape=jax.ShapeDtypeStruct((r, c), dtype),
        grid=(grid_r,),
        in_specs=[pl.BlockSpec((tr, c), lambda i: (i, 0))],
        out_specs=pl.BlockSpec((tr, c), lambda i: (i, 0)),
        # Pure overwrite of the same region it reads -> safe to alias in place.
        input_output_aliases={0: 0},
        compiler_params=pltpu.CompilerParams(
            dimension_semantics=("parallel",),  # shard rows across v7x's 2 TCs
            vmem_limit_bytes=32 << 20,          # headroom on v5e default / v7x 64 MiB
        ),
    )(x2)


def _identity_copy_pallas(x):
    """Lane-dense tiled identity pass (the order<=1 value->coeff prefilter)."""
    total = int(x.size)
    if total == 0:
        return x
    sub = _sublane_multiple(x.dtype)

    # Pick a lane-dense layout (R, C): C a multiple of 128 dividing the total,
    # preferring one that also leaves R a multiple of the sublane packing.
    c = 0
    for cand in (2048, 1024, 512, 256, 128):
        if total % cand == 0 and (total // cand) % sub == 0:
            c = cand
            break
    if c == 0:
        for cand in (2048, 1024, 512, 256, 128):
            if total % cand == 0:
                c = cand
                break

    if c:
        x2 = x.reshape(total // c, c)
    else:
        # TODO(synk): total not a multiple of 128 — keep the original trailing
        # dim (lanes partially masked) rather than pad in HBM.
        lead = math.prod(x.shape[:-1]) if x.ndim > 1 else 1
        last = x.shape[-1] if x.ndim >= 1 else 1
        x2 = x.reshape(lead, last)

    return _tiled_copy_2d(x2).reshape(x.shape)


def _as_order(interpolation):
    mapping = {"nearest": 0, "linear": 1, "fd": 1, 0: 0, 1: 1}
    if isinstance(interpolation, (list, tuple)):
        return [_as_order(i) for i in interpolation]
    if isinstance(interpolation, (int, str)) and interpolation in mapping:
        return mapping[interpolation]
    raise NotImplementedError(f"Unsupported interpolation: {interpolation!r}")


def value_to_coeff(x, interpolation="linear", bound="zero"):
    """JAX/Pallas equivalent of ValueToCoeff.forward.

    Parameters
    ----------
    x : (batch, channel, *spatial) array
    interpolation : 'linear', 'nearest', 'fd', 0 or 1 (or a sequence thereof)
    bound : boundary condition (irrelevant for order <= 1)

    Returns
    -------
    (batch, channel, *spatial) array of spline coefficients
    """
    orders = _as_order(interpolation)
    orders = orders if isinstance(orders, list) else [orders]
    if any(o > 1 for o in orders):
        # TODO(synk): IIR causal/anticausal spline prefilter for order >= 2.
        raise NotImplementedError("Only spline orders 0/1 supported")

    # For order <= 1 the prefilter is the identity: coefficients == values.
    # (`return x` is the zero-copy fast path; an explicit Pallas pass with
    # buffer aliasing is kept since a kernel is required here.)
    return _identity_copy_pallas(x)


if __name__ == "__main__":
    key = jax.random.PRNGKey(0)
    # (batch, channel, H, W) — NCHW, matching the PyTorch module's convention.
    x = jax.random.normal(key, (2, 4, 16, 16), dtype=jnp.float32)

    out = value_to_coeff(x, interpolation="linear", bound="zero")
    out = jax.block_until_ready(out)

    # Reference semantics: order-1 spline coefficients == values.
    assert out.shape == x.shape
    assert out.dtype == x.dtype
    assert bool(jnp.allclose(out, x)), "order-1 spline coeff must equal values"

    print("KERNEL_OK")
</pallas_src>

<mosaic_0001>
module attributes {stable_mosaic.version = 11 : i64} {
  func.func @_copy_kernel(%arg0: i32, %arg1: memref<8x256xf32, #tpu.memory_space<vmem>>, %arg2: memref<8x256xf32, #tpu.memory_space<vmem>>) attributes {dimension_semantics = [#tpu.dimension_semantics<parallel>], iteration_bounds = array<i64: 1>, scalar_prefetch = 0 : i64, scratch_operands = 0 : i64, tpu.core_type = #tpu.core_type<tc>, window_params = [{transform_indices = @transform_0, window_bounds = array<i64: 8, 256>}, {transform_indices = @transform_1, window_bounds = array<i64: 8, 256>}]} {
    %c0 = arith.constant 0 : index
    %c0_0 = arith.constant 0 : index
    %0 = vector.load %arg1[%c0, %c0_0] : memref<8x256xf32, #tpu.memory_space<vmem>>, vector<8x256xf32>
    %c0_1 = arith.constant 0 : index
    %c0_2 = arith.constant 0 : index
    %1 = vector.load %arg2[%c0_1, %c0_2] : memref<8x256xf32, #tpu.memory_space<vmem>>, vector<8x256xf32>
    tpu.vector_store %arg2[%c0_1, %c0_2], %0 {strides = array<i32>} : memref<8x256xf32, #tpu.memory_space<vmem>>, vector<8x256xf32>,
    return
  }
  func.func @transform_0(%arg0: i32) -> (i32, i32) {
    %c0_i32 = arith.constant 0 : i32
    %c0_i32_0 = arith.constant 0 : i32
    return %arg0, %c0_i32 : i32, i32
  }
  func.func @transform_1(%arg0: i32) -> (i32, i32) {
    %c0_i32 = arith.constant 0 : i32
    %c0_i32_0 = arith.constant 0 : i32
    return %arg0, %c0_i32 : i32, i32
  }
}

</mosaic_0001>

<llo_original>
// kernel: tpu_custom_call.1
$region0: #{tpu_custom_call.1}
  #allocation0 [shape = 'u32[]', space=smem, size = 0x4, offset = 0x4, fixed_abs, tag = 'smem constant byte address 0x4 - core index']
  #allocation1 [shape = 'u32[72,128]{1,0:T(1,128)}', space=vmem, size = 0x9000, scoped, tag = 'internal scratch']
  %s0 = inlined_call_operand.hbm [shape: f32[8,256], index: 0, kind: input, shape index: {}, may-alias: {0,1}]
  %s1 = inlined_call_operand.hbm [shape: f32[8,256], index: 1, kind: output, shape index: {}, may-alias: {0,1}]
  %s2 = sld [smem:[#allocation0]]
  $region18: #{tpu_custom_call.1} parent=0
    _
  %s4 = ssub.s32 1, %s2
  %s5 = scalar_select 0, %s4, %s2
  $region1: #{tpu_custom_call.1} parent=0
    #allocation2 [shape = 'u8[8192]{0}', space=vmem, size = 0x2000, scoped, tag = 'input window, operand 0, single buffered']
    #allocation3 [shape = 's32[1]{0}', space=sflag, size = 0x4, scoped, tag = 'scoped memory for tpu_custom_call.1']
    #allocation4 [shape = 's32[1]{0}', space=sflag, size = 0x4, scoped, tag = 'scoped memory for tpu_custom_call.1']
    #allocation5 [shape = 'u8[8192]{0}', space=vmem, size = 0x2000, scoped, tag = 'output window, operand 0, single buffered']
    %6 = vsyncpa [#allocation3], 0
    %7 = vsyncpa [#allocation4], 0
    // Predicated region
    $region2: #{tpu_custom_call.1} parent=1 // pred_check
      _
    $region3: #{tpu_custom_call.1} parent=1 // pred_check_branch
      %9 = sbr.rel (0) target = $region5
    $region4: #{tpu_custom_call.1} parent=1 // pred_region
      %11 = vsyncadd [#allocation3], 0
      %s13 = sshll.u32 %s0, 4
      %s14 = int_to_ptr.hbm [resolvable:$true] %s13
      %s15 = sshll.u32 [#allocation2], 4
      %s16 = int_to_ptr.vmem [resolvable:$true] %s15
      %18 = dma.hbm_to_vmem [thread:$0]  %s14, 256, %s16, [#allocation3]
    $region5: #{tpu_custom_call.1} parent=1 // pred_fallthru
      _
    // Predicated region
    $region6: #{tpu_custom_call.1} parent=1 // pred_check
      _
    $region7: #{tpu_custom_call.1} parent=1 // pred_check_branch
      %20 = sbr.rel (0) target = $region9
    $region8: #{tpu_custom_call.1} parent=1 // pred_region
      %22 = dma.done [#allocation3], 256
    $region9: #{tpu_custom_call.1} parent=1 // pred_fallthru
      _
    %v23 = vld [vmem:[#allocation2] sm:$0xff]
    %v24 = vld [vmem:[#allocation2 + $0x8] sm:$0xff]
    %25 = vst [vmem:[#allocation5] sm:$0xff] %v23
    %26 = vst [vmem:[#allocation5 + $0x8] sm:$0xff] %v24
    // Predicated region
    $region10: #{tpu_custom_call.1} parent=1 // pred_check
      _
    $region11: #{tpu_custom_call.1} parent=1 // pred_check_branch
      %28 = sbr.rel (0) target = $region13
    $region12: #{tpu_custom_call.1} parent=1 // pred_region
      %30 = vsyncadd [#allocation4], 0
      %s32 = sshll.u32 [#allocation5], 4
      %s33 = int_to_ptr.vmem [resolvable:$true] %s32
      %s34 = sshll.u32 %s1, 4
      %s35 = int_to_ptr.hbm [resolvable:$true] %s34
      %37 = dma.vmem_to_hbm [thread:$0]  %s33, 256, %s35, [#allocation4]
    $region13: #{tpu_custom_call.1} parent=1 // pred_fallthru
      _
    // Predicated region
    $region14: #{tpu_custom_call.1} parent=1 // pred_check
      _
    $region15: #{tpu_custom_call.1} parent=1 // pred_check_branch
      %39 = sbr.rel (0) target = $region17
    $region16: #{tpu_custom_call.1} parent=1 // pred_region
      %41 = dma.done [#allocation4], 256
    $region17: #{tpu_custom_call.1} parent=1 // pred_fallthru
      _
    %42 = vsyncpa [#allocation3], 1
    %43 = vsyncpa [#allocation4], 1

</llo_original>
